<compile_context>
chip_gen: v5e
topology: v5e:2x2
jax: 0.10.0
libtpu: 0.0.40
codegen_flags: <defaults>
</compile_context>

<pallas_src>
import functools

import jax
import jax.numpy as jnp
from jax.experimental import pallas as pl
from jax.experimental.pallas import tpu as pltpu


def _round_up(v: int, m: int) -> int:
    return (v + m - 1) // m * m


def _tpu_vmem_and_cores():
    """Per-TensorCore VMEM capacity and a TC-count heuristic (v7x: 64 MiB, 2 TCs)."""
    vmem_cap = None
    try:
        info = pltpu.get_tpu_info()
        vmem_cap = int(getattr(info, "vmem_capacity_bytes", 0)) or None
    except Exception:
        vmem_cap = None
    if vmem_cap is None:
        kind = ""
        try:
            kind = jax.devices()[0].device_kind.lower()
        except Exception:
            pass
        is_v7 = ("7" in kind) and ("v5" not in kind) and ("v6" not in kind)
        vmem_cap = (64 << 20) if is_v7 else (128 << 20)
    num_cores = 2 if vmem_cap <= (64 << 20) else 1
    return vmem_cap, num_cores


def _pick_tiles(n, f_in_p, f_out_p, x_isz, w_isz, o_isz, budget, num_cores):
    """Choose (tn, tk, x_resident) under the VMEM budget.

    Preference order: x resident with the largest K tile that fits (one HBM read of
    x, few large weight DMAs), then streaming x, shrinking tn only as a last resort.
    """
    # --- TN preference ---
    if f_out_p <= 128:
        tn_pref = f_out_p                       # single full-extent feature tile
    else:
        tn_pref = min(f_out_p, 512)
        # v7x (2 TCs): ensure the "parallel" j axis has >= 2 tiles to shard.
        if num_cores >= 2 and f_out_p >= 256 and f_out_p // tn_pref < 2:
            tn_pref = max(128, (f_out_p // 2) // 128 * 128)
        # Large batches: keep the per-K-step accumulator RMW (N*TN f32) small.
        if n >= 2048:
            tn_pref = min(tn_pref, 256)

    tn_cands = []
    t = tn_pref
    while True:
        tn_cands.append(t)
        if t <= 128:
            break
        t = max(128, (t // 2) // 128 * 128)

    def vmem_need(tn, tk, resident):
        x_b = 2 * n * (f_in_p if resident else tk) * x_isz   # conservative 2x buffers
        w_b = 2 * tk * tn * w_isz
        o_b = 2 * n * tn * o_isz
        acc = n * tn * 4
        return x_b + w_b + o_b + acc + (2 << 20)

    for resident in (True, False):
        for tn in tn_cands:
            tk = f_in_p
            while True:
                if vmem_need(tn, tk, resident) <= budget:
                    return tn, tk, resident
                if tk <= 128:
                    break
                tk = max(128, (tk // 2) // 128 * 128)
    # Best effort (may exceed budget for very large N) — see TODO(synk) above.
    return tn_cands[-1], min(f_in_p, 128), False


def _fc_bn_act_kernel(x_ref, w_ref, gamma_ref, beta_ref, o_ref, acc_ref, *,
                      activation: str, eps: float, tk: int, x_resident: bool):
    k = pl.program_id(1)

    @pl.when(k == 0)
    def _init():
        acc_ref[...] = jnp.zeros_like(acc_ref)

    if x_resident:
        start = pl.multiple_of(k * tk, 128)
        x_tile = x_ref[:, pl.ds(start, tk)]          # slice resident x along K
    else:
        x_tile = x_ref[...]                          # streamed (n, tk) tile

    # Partial Linear: acc += x_tile @ W^T_tile (MXU, native operand dtype, f32 acc).
    acc_ref[...] += jnp.dot(x_tile, w_ref[...], preferred_element_type=jnp.float32)

    @pl.when(k == pl.num_programs(1) - 1)
    def _epilogue():
        y = acc_ref[...]                             # [N, TN] f32
        inv_n = jnp.float32(1.0 / y.shape[0])
        # Single-pass BatchNorm1d (training mode) stats over the batch axis.
        mean = jnp.sum(y, axis=0, keepdims=True) * inv_n
        ex2 = jnp.sum(y * y, axis=0, keepdims=True) * inv_n
        var = jnp.maximum(ex2 - mean * mean, 0.0)    # clamp f32 round-off
        # Fused scale/shift: z = y * scale + shift.
        scale = gamma_ref[...].astype(jnp.float32) * jax.lax.rsqrt(var + eps)
        shift = beta_ref[...].astype(jnp.float32) - mean * scale
        z = y * scale + shift

        if activation == "leakyrelu":
            z = jnp.where(z >= 0, z, 0.01 * z)       # nn.LeakyReLU default slope
        elif activation == "sigmoid":
            z = jax.nn.sigmoid(z)
        # else: identity (no activation layer appended)

        o_ref[...] = z.astype(o_ref.dtype)


def fully_connected_layer(x, weight, bias, gamma, beta, *,
                          activation="leakyrelu", eps=1e-5):
    """x: [N, F_in]; weight: [F_out, F_in] (PyTorch nn.Linear convention).

    Implements Linear -> BatchNorm1d (training-mode batch stats) -> activation.
    """
    # Training-mode BN mean subtraction cancels the per-feature Linear bias exactly.
    del bias
    n, f_in = x.shape
    f_out = weight.shape[0]
    out_dtype = x.dtype

    x_isz = jnp.dtype(x.dtype).itemsize
    w_isz = jnp.dtype(weight.dtype).itemsize
    o_isz = jnp.dtype(out_dtype).itemsize

    vmem_cap, num_cores = _tpu_vmem_and_cores()
    budget = max(min(vmem_cap - (8 << 20), 100 << 20), 16 << 20)

    # Skip 128-padding for dims that already fit one lane tile (block == full dim
    # is allowed); otherwise pad to lane-dense multiples of 128.
    f_in_p = f_in if f_in <= 128 else _round_up(f_in, 128)
    f_out_p = f_out if f_out <= 128 else _round_up(f_out, 128)

    tn, tk, x_resident = _pick_tiles(n, f_in_p, f_out_p, x_isz, w_isz, o_isz,
                                     budget, num_cores)
    f_in_pp = _round_up(f_in_p, tk)
    f_out_pp = _round_up(f_out_p, tn)

    # One-time transpose in the wrapper -> standard contraction in the kernel.
    w_t = weight.T                                   # [F_in, F_out]
    if f_in_pp != f_in or f_out_pp != f_out:
        w_t = jnp.pad(w_t, ((0, f_in_pp - f_in), (0, f_out_pp - f_out)))
    if f_in_pp != f_in:
        x = jnp.pad(x, ((0, 0), (0, f_in_pp - f_in)))
    if f_out_pp != f_out:
        gamma = jnp.pad(gamma, (0, f_out_pp - f_out))
        beta = jnp.pad(beta, (0, f_out_pp - f_out))
    g2 = gamma.reshape(1, f_out_pp)
    b2 = beta.reshape(1, f_out_pp)

    grid = (f_out_pp // tn, f_in_pp // tk)

    if x_resident:
        # Same block index every step -> x is DMA'd from HBM only once.
        x_spec = pl.BlockSpec((n, f_in_pp), lambda j, k: (0, 0))
    else:
        x_spec = pl.BlockSpec((n, tk), lambda j, k: (0, k))

    need = (2 * n * (f_in_pp if x_resident else tk) * x_isz
            + 2 * tk * tn * w_isz
            + 2 * n * tn * o_isz
            + n * tn * 4
            + 8 * tn * 4
            + (2 << 20))
    vmem_limit = int(max(min(need, budget), 16 << 20))

    kernel = functools.partial(_fc_bn_act_kernel, activation=activation, eps=eps,
                               tk=tk, x_resident=x_resident)

    out = pl.pallas_call(
        kernel,
        out_shape=jax.ShapeDtypeStruct((n, f_out_pp), out_dtype),
        grid_spec=pltpu.PrefetchScalarGridSpec(
            num_scalar_prefetch=0,
            grid=grid,
            in_specs=[
                x_spec,                                        # x
                pl.BlockSpec((tk, tn), lambda j, k: (k, j)),   # W^T  [TK, TN]
                pl.BlockSpec((1, tn), lambda j, k: (0, j)),    # gamma [1, TN]
                pl.BlockSpec((1, tn), lambda j, k: (0, j)),    # beta  [1, TN]
            ],
            out_specs=pl.BlockSpec((n, tn), lambda j, k: (0, j)),
            scratch_shapes=[pltpu.VMEM((n, tn), jnp.float32)],
        ),
        compiler_params=pltpu.CompilerParams(
            dimension_semantics=("parallel", "arbitrary"),
            vmem_limit_bytes=vmem_limit,
        ),
    )(x, w_t, g2, b2)

    if f_out_pp != f_out:
        out = out[:, :f_out]
    return out


def _reference(x, weight, bias, gamma, beta, activation="leakyrelu", eps=1e-5):
    y = x.astype(jnp.float32) @ weight.T.astype(jnp.float32) + bias
    mean = jnp.mean(y, axis=0, keepdims=True)
    var = jnp.mean((y - mean) ** 2, axis=0, keepdims=True)
    z = gamma * (y - mean) / jnp.sqrt(var + eps) + beta
    if activation == "leakyrelu":
        z = jnp.where(z >= 0, z, 0.01 * z)
    elif activation == "sigmoid":
        z = jax.nn.sigmoid(z)
    return z.astype(x.dtype)


if __name__ == "__main__":
    # Small shapes consistent with the module: batch=8, in_features=32, out_features=64.
    N, F_IN, F_OUT = 8, 32, 64
    key = jax.random.PRNGKey(0)
    kx, kw, kb, kg, kbe = jax.random.split(key, 5)

    x = jax.random.normal(kx, (N, F_IN), dtype=jnp.float32)
    bound = 1.0 / jnp.sqrt(jnp.float32(F_IN))
    weight = jax.random.uniform(kw, (F_OUT, F_IN), minval=-bound, maxval=bound,
                                dtype=jnp.float32)
    bias = jax.random.uniform(kb, (F_OUT,), minval=-bound, maxval=bound,
                              dtype=jnp.float32)
    # Non-trivial affine params to exercise the BN scale/shift path.
    gamma = 1.0 + 0.1 * jax.random.normal(kg, (F_OUT,), dtype=jnp.float32)
    beta = 0.1 * jax.random.normal(kbe, (F_OUT,), dtype=jnp.float32)

    ok = True
    for act in ("leakyrelu", "sigmoid"):
        out = fully_connected_layer(x, weight, bias, gamma, beta, activation=act)
        out = jax.block_until_ready(out)
        ref = _reference(x, weight, bias, gamma, beta, activation=act)
        ok &= out.shape == (N, F_OUT)
        ok &= bool(jnp.allclose(out, ref, atol=1e-4, rtol=1e-4))
    assert ok, "mismatch vs reference"

    print("KERNEL_OK")
</pallas_src>

<mosaic_0001>
module attributes {stable_mosaic.version = 11 : i64} {
  func.func @_fc_bn_act_kernel(%arg0: i32, %arg1: i32, %arg2: memref<8x32xf32, #tpu.memory_space<vmem>>, %arg3: memref<32x64xf32, #tpu.memory_space<vmem>>, %arg4: memref<1x64xf32, #tpu.memory_space<vmem>>, %arg5: memref<1x64xf32, #tpu.memory_space<vmem>>, %arg6: memref<8x64xf32, #tpu.memory_space<vmem>>, %arg7: memref<8x64xf32, #tpu.memory_space<vmem>>) attributes {dimension_semantics = [#tpu.dimension_semantics<parallel>, #tpu.dimension_semantics<arbitrary>], iteration_bounds = array<i64: 1, 1>, scalar_prefetch = 0 : i64, scratch_operands = 1 : i64, tpu.core_type = #tpu.core_type<tc>, window_params = [{pipeline_mode = #tpu.pipeline_mode<synchronous>, transform_indices = @transform_0, window_bounds = array<i64: 8, 32>}, {transform_indices = @transform_1, window_bounds = array<i64: 32, 64>}, {transform_indices = @transform_2, window_bounds = array<i64: 1, 64>}, {transform_indices = @transform_3, window_bounds = array<i64: 1, 64>}, {transform_indices = @transform_4, window_bounds = array<i64: 8, 64>}]} {
    %c0_i32 = arith.constant 0 : i32
    %0 = arith.cmpi eq, %arg1, %c0_i32 : i32
    %1 = arith.extui %0 : i1 to i32
    %c0_i32_0 = arith.constant 0 : i32
    %2 = arith.cmpi ne, %1, %c0_i32_0 : i32
    scf.if %2 {
      %cst_9 = arith.constant 0.000000e+00 : f32
      %15 = vector.broadcast %cst_9 : f32 to vector<8x64xf32>
      %c0_10 = arith.constant 0 : index
      %c0_11 = arith.constant 0 : index
      %16 = vector.load %arg7[%c0_10, %c0_11] : memref<8x64xf32, #tpu.memory_space<vmem>>, vector<8x64xf32>
      tpu.vector_store %arg7[%c0_10, %c0_11], %15 {strides = array<i32>} : memref<8x64xf32, #tpu.memory_space<vmem>>, vector<8x64xf32>,
    } else {
    }
    %c32_i32 = arith.constant 32 : i32
    %3 = arith.muli %arg1, %c32_i32 : i32
    %4 = tpu.assume_multiple %3, 128 : i32
    %c0 = arith.constant 0 : index
    %5 = arith.index_cast %4 : i32 to index
    %6 = vector.load %arg2[%c0, %5] : memref<8x32xf32, #tpu.memory_space<vmem>>, vector<8x32xf32>
    %c0_1 = arith.constant 0 : index
    %c0_2 = arith.constant 0 : index
    %7 = vector.load %arg7[%c0_1, %c0_2] : memref<8x64xf32, #tpu.memory_space<vmem>>, vector<8x64xf32>
    %c0_3 = arith.constant 0 : index
    %c0_4 = arith.constant 0 : index
    %8 = vector.load %arg3[%c0_3, %c0_4] : memref<32x64xf32, #tpu.memory_space<vmem>>, vector<32x64xf32>
    %cst = arith.constant dense<0.000000e+00> : vector<8x64xf32>
    %9 = tpu.matmul %6, %8, %cst {dimension_numbers = #tpu.dot_dimension_numbers<[1], [0], [0], [1], [0, 0, 1, 1], [], []>} : vector<8x32xf32>, vector<32x64xf32>, vector<8x64xf32> -> vector<8x64xf32>
    %10 = arith.addf %7, %9 : vector<8x64xf32>
    %c0_5 = arith.constant 0 : index
    %c0_6 = arith.constant 0 : index
    %11 = vector.load %arg7[%c0_5, %c0_6] : memref<8x64xf32, #tpu.memory_space<vmem>>, vector<8x64xf32>
    tpu.vector_store %arg7[%c0_5, %c0_6], %10 {strides = array<i32>} : memref<8x64xf32, #tpu.memory_space<vmem>>, vector<8x64xf32>,
    %c0_i32_7 = arith.constant 0 : i32
    %12 = arith.cmpi eq, %arg1, %c0_i32_7 : i32
    %13 = arith.extui %12 : i1 to i32
    %c0_i32_8 = arith.constant 0 : i32
    %14 = arith.cmpi ne, %13, %c0_i32_8 : i32
    scf.if %14 {
      %c0_9 = arith.constant 0 : index
      %c0_10 = arith.constant 0 : index
      %15 = vector.load %arg7[%c0_9, %c0_10] : memref<8x64xf32, #tpu.memory_space<vmem>>, vector<8x64xf32>
      %cst_11 = arith.constant dense<0.000000e+00> : vector<64xf32>
      %16 = vector.multi_reduction <add>, %15, %cst_11 [0] : vector<8x64xf32> to vector<64xf32>
      %17 = vector.shape_cast %16 : vector<64xf32> to vector<1x64xf32>
      %cst_12 = arith.constant 1.250000e-01 : f32
      %18 = vector.broadcast %cst_12 : f32 to vector<1x64xf32>
      %19 = arith.mulf %17, %18 : vector<1x64xf32>
      %20 = arith.mulf %15, %15 : vector<8x64xf32>
      %cst_13 = arith.constant dense<0.000000e+00> : vector<64xf32>
      %21 = vector.multi_reduction <add>, %20, %cst_13 [0] : vector<8x64xf32> to vector<64xf32>
      %22 = vector.shape_cast %21 : vector<64xf32> to vector<1x64xf32>
      %cst_14 = arith.constant 1.250000e-01 : f32
      %23 = vector.broadcast %cst_14 : f32 to vector<1x64xf32>
      %24 = arith.mulf %22, %23 : vector<1x64xf32>
      %25 = arith.mulf %19, %19 : vector<1x64xf32>
      %26 = arith.subf %24, %25 : vector<1x64xf32>
      %cst_15 = arith.constant 0.000000e+00 : f32
      %27 = vector.broadcast %cst_15 : f32 to vector<1x64xf32>
      %28 = arith.maximumf %26, %27 : vector<1x64xf32>
      %c0_16 = arith.constant 0 : index
      %c0_17 = arith.constant 0 : index
      %29 = vector.load %arg4[%c0_16, %c0_17] : memref<1x64xf32, #tpu.memory_space<vmem>>, vector<1x64xf32>
      %cst_18 = arith.constant 9.99999974E-6 : f32
      %30 = vector.broadcast %cst_18 : f32 to vector<1x64xf32>
      %31 = arith.addf %28, %30 : vector<1x64xf32>
      %32 = math.rsqrt %31 : vector<1x64xf32>
      %33 = arith.mulf %29, %32 : vector<1x64xf32>
      %c0_19 = arith.constant 0 : index
      %c0_20 = arith.constant 0 : index
      %34 = vector.load %arg5[%c0_19, %c0_20] : memref<1x64xf32, #tpu.memory_space<vmem>>, vector<1x64xf32>
      %35 = arith.mulf %19, %33 : vector<1x64xf32>
      %36 = arith.subf %34, %35 : vector<1x64xf32>
      %37 = vector.broadcast %33 : vector<1x64xf32> to vector<8x64xf32>
      %38 = arith.mulf %15, %37 : vector<8x64xf32>
      %39 = vector.broadcast %36 : vector<1x64xf32> to vector<8x64xf32>
      %40 = arith.addf %38, %39 : vector<8x64xf32>
      %cst_21 = arith.constant 0.000000e+00 : f32
      %41 = vector.broadcast %cst_21 : f32 to vector<8x64xf32>
      %42 = arith.cmpf oge, %40, %41 : vector<8x64xf32>
      %cst_22 = arith.constant 0.00999999977 : f32
      %43 = vector.broadcast %cst_22 : f32 to vector<8x64xf32>
      %44 = arith.mulf %43, %40 : vector<8x64xf32>
      %45 = arith.select %42, %40, %44 : vector<8x64xi1>, vector<8x64xf32>
      %c0_23 = arith.constant 0 : index
      %c0_24 = arith.constant 0 : index
      %46 = vector.load %arg6[%c0_23, %c0_24] : memref<8x64xf32, #tpu.memory_space<vmem>>, vector<8x64xf32>
      tpu.vector_store %arg6[%c0_23, %c0_24], %45 {strides = array<i32>} : memref<8x64xf32, #tpu.memory_space<vmem>>, vector<8x64xf32>,
    } else {
    }
    return
  }
  func.func @transform_0(%arg0: i32, %arg1: i32) -> (i32, i32) {
    %c0_i32 = arith.constant 0 : i32
    %c0_i32_0 = arith.constant 0 : i32
    %c0_i32_1 = arith.constant 0 : i32
    return %c0_i32, %c0_i32_0 : i32, i32
  }
  func.func @transform_1(%arg0: i32, %arg1: i32) -> (i32, i32) {
    %c0_i32 = arith.constant 0 : i32
    return %arg1, %arg0 : i32, i32
  }
  func.func @transform_2(%arg0: i32, %arg1: i32) -> (i32, i32) {
    %c0_i32 = arith.constant 0 : i32
    %c0_i32_0 = arith.constant 0 : i32
    return %c0_i32, %arg0 : i32, i32
  }
  func.func @transform_3(%arg0: i32, %arg1: i32) -> (i32, i32) {
    %c0_i32 = arith.constant 0 : i32
    %c0_i32_0 = arith.constant 0 : i32
    return %c0_i32, %arg0 : i32, i32
  }
  func.func @transform_4(%arg0: i32, %arg1: i32) -> (i32, i32) {
    %c0_i32 = arith.constant 0 : i32
    %c0_i32_0 = arith.constant 0 : i32
    return %c0_i32, %arg0 : i32, i32
  }
}

</mosaic_0001>

<llo_original>
// kernel: tpu_custom_call.1
$region0: #{tpu_custom_call.1}
  #allocation0 [shape = 'u32[]', space=smem, size = 0x4, offset = 0x4, fixed_abs, tag = 'smem constant byte address 0x4 - core index']
  #allocation1 [shape = 'u32[72,128]{1,0:T(1,128)}', space=vmem, size = 0x9000, scoped, tag = 'internal scratch']
  #allocation2 [shape = 'f32[8,64]{1,0:T(8,128)}', space=vmem, size = 0x1000, scoped, tag = 'scratch operand']
  %s0 = inlined_call_operand.hbm [shape: f32[8,32], index: 0, kind: input, shape index: {}]
  %s1 = inlined_call_operand.hbm [shape: f32[32,64], index: 1, kind: input, shape index: {}]
  %s2 = inlined_call_operand.vmem [shape: f32[1,64], index: 2, kind: input, shape index: {}]
  %s3 = inlined_call_operand.vmem [shape: f32[1,64], index: 3, kind: input, shape index: {}]
  %s4 = inlined_call_operand.hbm [shape: f32[8,64], index: 4, kind: output, shape index: {}]
  %s5 = sld [smem:[#allocation0]]
  $region42: #{tpu_custom_call.1} parent=0
    _
  %s7 = ssub.s32 1, %s5
  %s8 = scalar_select 0, %s7, %s5
  $region1: #{tpu_custom_call.1} parent=0
    #allocation3 [shape = 'u8[4096]{0}', space=vmem, size = 0x1000, scoped, tag = 'input window, operand 0, single buffered']
    #allocation4 [shape = 's32[1]{0}', space=sflag, size = 0x4, scoped, tag = 'scoped memory for tpu_custom_call.1']
    #allocation5 [shape = 's32[1]{0}', space=sflag, size = 0x4, scoped, tag = 'scoped memory for tpu_custom_call.1']
    #allocation6 [shape = 'u8[16384]{0}', space=vmem, size = 0x4000, scoped, tag = 'input window, operand 1, single buffered']
    #allocation7 [shape = 's32[1]{0}', space=sflag, size = 0x4, scoped, tag = 'scoped memory for tpu_custom_call.1']
    #allocation8 [shape = 'u8[4096]{0}', space=vmem, size = 0x1000, scoped, tag = 'output window, operand 0, single buffered']
    %9 = vsyncpa [#allocation4], 0
    %10 = vsyncpa [#allocation7], 0
    %11 = vsyncpa [#allocation5], 0
    // Predicated region
    $region2: #{tpu_custom_call.1} parent=1 // pred_check
      _
    $region3: #{tpu_custom_call.1} parent=1 // pred_check_branch
      %13 = sbr.rel (0) target = $region5
    $region4: #{tpu_custom_call.1} parent=1 // pred_region
      %15 = vsyncadd [#allocation4], 0
      %s17 = sshll.u32 %s0, 4
      %s18 = int_to_ptr.hbm [resolvable:$true] %s17
      %s19 = sshll.u32 [#allocation3], 4
      %s20 = int_to_ptr.vmem [resolvable:$true] %s19
      %22 = dma.hbm_to_vmem [thread:$0]  %s18, 128, %s20, [#allocation4]
    $region5: #{tpu_custom_call.1} parent=1 // pred_fallthru
      _
    // Predicated region
    $region6: #{tpu_custom_call.1} parent=1 // pred_check
      _
    $region7: #{tpu_custom_call.1} parent=1 // pred_check_branch
      %24 = sbr.rel (0) target = $region9
    $region8: #{tpu_custom_call.1} parent=1 // pred_region
      %26 = vsyncadd [#allocation7], 0
      %s27 = sshll.u32 %s1, 4
      %s28 = int_to_ptr.hbm [resolvable:$true] %s27
      %s29 = sshll.u32 [#allocation6], 4
      %s30 = int_to_ptr.vmem [resolvable:$true] %s29
      %35 = dma.hbm_to_vmem [thread:$0]  %s28, 512, %s30, [#allocation7], 128, 128, 8
    $region9: #{tpu_custom_call.1} parent=1 // pred_fallthru
      _
    // Predicated region
    $region10: #{tpu_custom_call.1} parent=1 // pred_check
      _
    $region11: #{tpu_custom_call.1} parent=1 // pred_check_branch
      %37 = sbr.rel (0) target = $region13
    $region12: #{tpu_custom_call.1} parent=1 // pred_region
      _
    $region13: #{tpu_custom_call.1} parent=1 // pred_fallthru
      _
    // Predicated region
    $region14: #{tpu_custom_call.1} parent=1 // pred_check
      _
    $region15: #{tpu_custom_call.1} parent=1 // pred_check_branch
      %39 = sbr.rel (0) target = $region17
    $region16: #{tpu_custom_call.1} parent=1 // pred_region
      _
    $region17: #{tpu_custom_call.1} parent=1 // pred_fallthru
      _
    // Predicated region
    $region18: #{tpu_custom_call.1} parent=1 // pred_check
      _
    $region19: #{tpu_custom_call.1} parent=1 // pred_check_branch
      %41 = sbr.rel (0) target = $region21
    $region20: #{tpu_custom_call.1} parent=1 // pred_region
      %43 = dma.done [#allocation4], 128
    $region21: #{tpu_custom_call.1} parent=1 // pred_fallthru
      _
    // Predicated region
    $region22: #{tpu_custom_call.1} parent=1 // pred_check
      _
    $region23: #{tpu_custom_call.1} parent=1 // pred_check_branch
      %45 = sbr.rel (0) target = $region25
    $region24: #{tpu_custom_call.1} parent=1 // pred_region
      %47 = dma.done [#allocation7], 512
    $region25: #{tpu_custom_call.1} parent=1 // pred_fallthru
      _
    %p48 = scmp.eq.s32.totalorder 0, 0
    // Predicated region
    $region26: #{tpu_custom_call.1} parent=1 // pred_check
      %p49 = pneg %p48
    $region27: #{tpu_custom_call.1} parent=1 // pred_check_branch
      %51 = sbr.rel (%p49) target = $region29
    $region28: #{tpu_custom_call.1} parent=1 // pred_region
      %vm52 = vcmask 523264
      %53 = vst.msk [vmem:[#allocation2] sm:$0xff] %vm52, 0.0
    $region29: #{tpu_custom_call.1} parent=1 // pred_fallthru
      _
    %s54 = smul.u32 0, 32
    %s55 = sshra.s32 %s54, 7
    %s56 = sand.u32 %s54, 127
    %s57 = scalar_lea.vmem [#allocation3], %s55
    %v58 = vld [vmem:[%s57] sm:$0xff]
    %v59 = vld [vmem:[#allocation2] sm:$0xff]
    %v60 = vld [vmem:[#allocation6] sm:$0xff]
    %v61 = vld [vmem:[#allocation6 + $0x8] sm:$0xff]
    %v62 = vld [vmem:[#allocation6 + $0x10] sm:$0xff]
    %v63 = vld [vmem:[#allocation6 + $0x18] sm:$0xff]
    %vm64 = vcmask 261120
    %v66 = vsel %vm64, %v58, 0
    %68 = vmatpush.msra.mxu0 0.0
    %69 = vmatpush.msra.mxu0 0.0
    %70 = vmatpush.msra.mxu0 0.0
    %71 = vmatpush.msra.mxu0 0.0
    %72 = vmatpush.msra.mxu0 0.0
    %73 = vmatpush.msra.mxu0 0.0
    %74 = vmatpush.msra.mxu0 0.0
    %75 = vmatpush.msra.mxu0 0.0
    %76 = vmatpush.msra.mxu0 0.0
    %77 = vmatpush.msra.mxu0 0.0
    %78 = vmatpush.msra.mxu0 0.0
    %79 = vmatpush.msra.mxu0 0.0
    %80 = vmatpush.msra.mxu0 %v63
    %81 = vmatpush.msra.mxu0 %v62
    %82 = vmatpush.msra.mxu0 %v61
    %83 = vmatpush.msra.mxu0 %v60
    %84 = vmatmul.f32.gmra.mxu0 %v66
    %v85 = vpop.f32.mrf.mxu0
    %v86 = vadd.f32 0.0, %v85
    %87 = vdwg.mxu0
    %v88 = vadd.f32 %v59, %v86
    %vm89 = vcmask 523264
    %90 = vst.msk [vmem:[#allocation2] sm:$0xff] %vm89, %v88
    // Predicated region
    $region30: #{tpu_custom_call.1} parent=1 // pred_check
      %p91 = pneg %p48
    $region31: #{tpu_custom_call.1} parent=1 // pred_check_branch
      %93 = sbr.rel (%p91) target = $region33
    $region32: #{tpu_custom_call.1} parent=1 // pred_region
      %v94 = vld [vmem:[#allocation2] sm:$0xff]
      %v95 = vsel %vm89, %v94, 0.0
      %v96 = vrot.slane %v95, 4
      %v97 = vadd.f32 %v95, %v96
      %v98 = vrot.slane %v97, 2
      %v99 = vadd.f32 %v97, %v98
      %v100 = vrot.slane %v99, 1
      %v101 = vadd.f32 %v99, %v100
      %v102 = vmul.f32 %v101, 0.125
      %v103 = vmul.f32 %v94, %v94
      %v104 = vsel %vm89, %v103, 0.0
      %v105 = vrot.slane %v104, 4
      %v106 = vadd.f32 %v104, %v105
      %v107 = vrot.slane %v106, 2
      %v108 = vadd.f32 %v106, %v107
      %v109 = vrot.slane %v108, 1
      %v110 = vadd.f32 %v108, %v109
      %v111 = vmul.f32 %v110, 0.125
      %v112 = vmul.f32 %v102, %v102
      %v113 = vsub.f32 %v111, %v112
      %v114 = vmax.f32 %v113, 0.0
      %v115 = vld [vmem:[%s2] sm:$0x1]
      %v116 = vadd.f32 %v114, 1e-05
      %v117 = vrsqrt.pop %v116
      %v118 = vmul.f32 %v117, %v116
      %v119 = vmul.f32 %v118, %v117
      %v120 = vmul.f32 0.5, %v119
      %v121 = vsub.f32 1.5, %v120
      %v122 = vmul.f32 %v117, %v121
      %vm123 = vweird.f32 %v116
      %vm124 = vweird.f32 %v117
      %vm125 = vmor %vm123, %vm124
      %v126 = vsel %vm125, %v117, %v122
      %v127 = vmul.f32 %v115, %v126
      %v128 = vld [vmem:[%s3] sm:$0x1]
      %v129 = vmul.f32 %v102, %v127
      %v130 = vsub.f32 %v128, %v129
      %v132 = vperm.slane %v127, 0
      %v134 = vmul.f32 %v94, %v132
      %v136 = vperm.slane %v130, 0
      %v138 = vadd.f32 %v134, %v136
      %vm139 = vcmp.ge.f32.partialorder %v138, 0.0
      %v140 = vmul.f32 %v138, 0.01
      %v141 = vsel %vm139, %v138, %v140
      %142 = vst.msk [vmem:[#allocation8] sm:$0xff] %vm89, %v141
    $region33: #{tpu_custom_call.1} parent=1 // pred_fallthru
      _
    // Predicated region
    $region34: #{tpu_custom_call.1} parent=1 // pred_check
      _
    $region35: #{tpu_custom_call.1} parent=1 // pred_check_branch
      %144 = sbr.rel (0) target = $region37
    $region36: #{tpu_custom_call.1} parent=1 // pred_region
      %146 = vsyncadd [#allocation5], 0
      %s148 = sshll.u32 [#allocation8], 4
      %s149 = int_to_ptr.vmem [resolvable:$true] %s148
      %s150 = sshll.u32 %s4, 4
      %s151 = int_to_ptr.hbm [resolvable:$true] %s150
      %153 = dma.vmem_to_hbm [thread:$0]  %s149, 128, %s151, [#allocation5]
    $region37: #{tpu_custom_call.1} parent=1 // pred_fallthru
      _
    // Predicated region
    $region38: #{tpu_custom_call.1} parent=1 // pred_check
      _
    $region39: #{tpu_custom_call.1} parent=1 // pred_check_branch
      %155 = sbr.rel (0) target = $region41
    $region40: #{tpu_custom_call.1} parent=1 // pred_region
      %157 = dma.done [#allocation5], 128
    $region41: #{tpu_custom_call.1} parent=1 // pred_fallthru
      _
    %158 = vsyncpa [#allocation4], 1
    %159 = vsyncpa [#allocation7], 1
    %160 = vsyncpa [#allocation5], 1

</llo_original>
